<compile_context>
chip_gen: v7x
topology: tpu7x:2x2x1
jax: 0.10.0
libtpu: 0.0.40
codegen_flags: <defaults>
</compile_context>

<pallas_src>
import numpy as np
import jax
import jax.numpy as jnp
from jax.experimental import pallas as pl
from jax.experimental.pallas import tpu as pltpu


def _round_up(x, m):
    return (x + m - 1) // m * m


def _cdiv(a, b):
    return (a + b - 1) // b


def _vmem_capacity_bytes():
    # Conservative default = v7x per-TensorCore VMEM (smallest in the fleet).
    cap = 64 << 20
    try:
        cap = int(pltpu.get_tpu_info().vmem_capacity_bytes)
    except Exception:
        pass
    return cap


def _pick_hw_tile(HW, B, Cp):
    """Pick the lane-dim tile T for the HW axis and the tile count.

    * T is either == HW (a full-dim block is always legal) or a multiple of 128.
    * Sized against a VMEM budget (double-buffered f32 in/out tiles + f32/bf16
      temporaries), capped at 4096 lanes.
    * Balanced across tiles (no T=128 fallback: e.g. HW=3136 -> T=1664, 2 tiles).
    * Guarantees >= 2 grid steps when possible so both v7x TensorCores get work.
    """
    budget = min(int(_vmem_capacity_bytes() * 0.6), 72 << 20)
    per_lane = Cp * 28  # ~dbl-buffered f32 in+out tiles + f32/bf16 temporaries
    t_cap = max(128, min(4096, (budget // per_lane) // 128 * 128))

    if HW <= t_cap:
        T = HW                               # full-dim block: legal for any HW
    else:
        n = _cdiv(HW, t_cap)
        T = _round_up(_cdiv(HW, n), 128)     # balanced, lane-aligned
    n_t = _cdiv(HW, T)

    # Megacore (v7x): ensure the (B, n_t) grid has at least 2 parallel steps.
    if B * n_t < 2 and HW >= 256:
        T = _round_up(_cdiv(HW, 2), 128)
        n_t = _cdiv(HW, T)
    return T, n_t


def scse_kernel(s_ref, wc_ref, bc_ref, x_ref, o_ref):
    """One (batch, hw-tile) grid step.

    s_ref  : (1, Cp, 1)  f32   channel gate sigmoid(MLP(mean_hw(x)))  (cSE)
    wc_ref : (Cp, Cp)    bf16  1x1-conv weight, PyTorch (out, in) layout
    bc_ref : (Cp, 1)     f32   1x1-conv bias
    x_ref  : (1, Cp, T)  f32   input tile  (C on sublanes, HW on lanes)
    o_ref  : (1, Cp, T)  f32   output tile
    """
    x = x_ref[0]                                                   # (Cp, T) f32

    # sSE branch: 1x1 conv == (Cout, Cin) @ (Cin, T) on the MXU,
    # bf16 operands / f32 accumulate, plus bias.
    conv = jnp.dot(wc_ref[...], x.astype(jnp.bfloat16),
                   preferred_element_type=jnp.float32) + bc_ref[...]  # (Cp,T) f32

    # sigmoid via EUP-only ops (exp on negated arg + approx reciprocal):
    # keeps the VALU slot free; accuracy is plenty for a gate.
    sig = pl.reciprocal(1.0 + jnp.exp(-conv), approx=True)         # (Cp, T) f32

    # Fused gate: out = x * (s + sigmoid(conv)) == cSE + sSE.
    o_ref[0] = (x * (s_ref[0] + sig)).astype(o_ref.dtype)


def scse_pallas(x_nchw, w1, b1, w2, b2, wc, bc):
    """SCSE forward (cSE(x) + sSE(x)) as a fused Pallas TPU kernel.

    x_nchw : (B, C, H, W) f32
    w1     : (C, C//r)   linear_1 weight, matmul (in, out) layout
    b1     : (C//r,)
    w2     : (C//r, C)   linear_2 weight, matmul (in, out) layout
    b2     : (C,)
    wc     : (C, C)      1x1 conv weight, PyTorch (out, in) layout
    bc     : (C,)
    Returns (B, C, H, W) f32.
    """
    B, C, H, W = x_nchw.shape
    HW = H * W
    x = x_nchw.reshape(B, C, HW)          # contiguous reshape: free, no HBM pass

    # ---- cSE channel gate: tiny (B, C) MLP, hoisted out of the per-tile kernel.
    # The global mean necessarily needs one full read of x; XLA lowers this to
    # a single fused reduce pass.
    pooled = x.mean(-1)                                          # (B, C) f32
    s = jax.nn.sigmoid(jax.nn.relu(pooled @ w1 + b1) @ w2 + b2)  # (B, C) f32

    # ---- channel padding ONLY when C is not a sublane multiple (rare).
    # In the common case (C % 8 == 0) x is fed to the kernel untouched (f32),
    # so the kernel reads/writes HBM exactly once each with no pad/cast/unpad
    # passes.
    Cp = _round_up(C, 8)
    if Cp != C:
        x = jnp.pad(x, ((0, 0), (0, Cp - C), (0, 0)))
        wc = jnp.pad(wc, ((0, Cp - C), (0, Cp - C)))
        bc = jnp.pad(bc, (0, Cp - C))
        s = jnp.pad(s, ((0, 0), (0, Cp - C)))

    wc_bf = wc.astype(jnp.bfloat16)                    # tiny (Cp, Cp): negligible
    bc_2d = bc.reshape(Cp, 1).astype(jnp.float32)
    s_3d = s[:, :, None].astype(jnp.float32)           # (B, Cp, 1)

    # ---- HW tiling (lane dim). A partial last tile is handled by Pallas
    # boundary clamping (out-of-range lanes are never written back), so HW is
    # never padded/unpadded in HBM.
    T, n_t = _pick_hw_tile(HW, B, Cp)

    vmem_limit = min(int(_vmem_capacity_bytes() * 0.75), 96 << 20)

    cost = pl.CostEstimate(
        flops=2 * B * HW * Cp * Cp + 5 * B * HW * Cp,
        transcendentals=B * HW * Cp,
        bytes_accessed=2 * B * Cp * HW * 4 + B * Cp * 4 + Cp * Cp * 2 + Cp * 4,
    )

    out = pl.pallas_call(
        scse_kernel,
        out_shape=jax.ShapeDtypeStruct((B, Cp, HW), jnp.float32),
        grid_spec=pltpu.PrefetchScalarGridSpec(
            num_scalar_prefetch=0,
            grid=(B, n_t),
            in_specs=[
                pl.BlockSpec((1, Cp, 1), lambda b, t: (b, 0, 0)),   # s   (cSE gate)
                pl.BlockSpec((Cp, Cp), lambda b, t: (0, 0)),        # wc  (resident)
                pl.BlockSpec((Cp, 1), lambda b, t: (0, 0)),         # bc  (resident)
                pl.BlockSpec((1, Cp, T), lambda b, t: (b, 0, t)),   # x tile
            ],
            out_specs=pl.BlockSpec((1, Cp, T), lambda b, t: (b, 0, t)),
        ),
        compiler_params=pltpu.CompilerParams(
            dimension_semantics=("parallel", "parallel"),
            vmem_limit_bytes=vmem_limit,
        ),
        cost_estimate=cost,
    )(s_3d, wc_bf, bc_2d, x)

    if Cp != C:
        out = out[:, :C]                 # only for unaligned channel counts
    return out.reshape(B, C, H, W)       # contiguous reshape: free


def scse_reference(x, w1, b1, w2, b2, wc, bc):
    """Pure-JAX f32 reference matching the PyTorch SCSE forward."""
    B, C, H, W = x.shape
    pooled = x.reshape(B, C, H * W).mean(-1)                      # (B, C)
    s = jax.nn.sigmoid(jax.nn.relu(pooled @ w1 + b1) @ w2 + b2)   # (B, C)
    conv = jnp.einsum('oc,bchw->bohw', wc, x) + bc[None, :, None, None]
    return x * s[:, :, None, None] + x * jax.nn.sigmoid(conv)


if __name__ == "__main__":
    B, C, H, W = 2, 4, 16, 16
    r = 2
    Cr = C // r

    key = jax.random.PRNGKey(0)
    kx, k1, k2, k3, k4, k5, k6 = jax.random.split(key, 7)

    x = jax.random.normal(kx, (B, C, H, W), dtype=jnp.float32)

    w1 = jax.random.normal(k1, (C, Cr), dtype=jnp.float32) * 0.5    # linear_1 (in, out)
    b1 = jax.random.normal(k2, (Cr,), dtype=jnp.float32) * 0.1
    w2 = jax.random.normal(k3, (Cr, C), dtype=jnp.float32) * 0.5    # linear_2 (in, out)
    b2 = jax.random.normal(k4, (C,), dtype=jnp.float32) * 0.1
    wc = jax.random.normal(k5, (C, C), dtype=jnp.float32) * 0.5     # 1x1 conv (out, in)
    bc = jax.random.normal(k6, (C,), dtype=jnp.float32) * 0.1

    out = jax.block_until_ready(scse_pallas(x, w1, b1, w2, b2, wc, bc))
    ref = jax.block_until_ready(scse_reference(x, w1, b1, w2, b2, wc, bc))

    assert out.shape == (B, C, H, W)
    assert out.dtype == jnp.float32
    np.testing.assert_allclose(np.asarray(out), np.asarray(ref), rtol=2e-2, atol=2e-2)

    print("KERNEL_OK")
</pallas_src>

<mosaic_0001>
module attributes {stable_mosaic.version = 11 : i64} {
  func.func @scse_kernel(%arg0: i32, %arg1: i32, %arg2: memref<1x8x1xf32, #tpu.memory_space<vmem>>, %arg3: memref<8x8xbf16, #tpu.memory_space<vmem>>, %arg4: memref<8x1xf32, #tpu.memory_space<vmem>>, %arg5: memref<1x8x256xf32, #tpu.memory_space<vmem>>, %arg6: memref<1x8x256xf32, #tpu.memory_space<vmem>>) attributes {dimension_semantics = [#tpu.dimension_semantics<parallel>, #tpu.dimension_semantics<parallel>], iteration_bounds = array<i64: 2, 1>, scalar_prefetch = 0 : i64, scratch_operands = 0 : i64, tpu.core_type = #tpu.core_type<tc>, window_params = [{transform_indices = @transform_0, window_bounds = array<i64: 1, 8, 1>}, {pipeline_mode = #tpu.pipeline_mode<synchronous>, transform_indices = @transform_1, window_bounds = array<i64: 8, 8>}, {pipeline_mode = #tpu.pipeline_mode<synchronous>, transform_indices = @transform_2, window_bounds = array<i64: 8, 1>}, {transform_indices = @transform_3, window_bounds = array<i64: 1, 8, 256>}, {transform_indices = @transform_4, window_bounds = array<i64: 1, 8, 256>}]} {
    %c0 = arith.constant 0 : index
    %c0_0 = arith.constant 0 : index
    %c0_1 = arith.constant 0 : index
    %0 = vector.load %arg5[%c0, %c0_0, %c0_1] : memref<1x8x256xf32, #tpu.memory_space<vmem>>, vector<1x8x256xf32>
    %1 = vector.shape_cast %0 : vector<1x8x256xf32> to vector<8x256xf32>
    %c0_2 = arith.constant 0 : index
    %c0_3 = arith.constant 0 : index
    %2 = vector.load %arg3[%c0_2, %c0_3] : memref<8x8xbf16, #tpu.memory_space<vmem>>, vector<8x8xbf16>
    %3 = arith.truncf %1 : vector<8x256xf32> to vector<8x256xbf16>
    %cst = arith.constant dense<0.000000e+00> : vector<8x256xf32>
    %4 = tpu.matmul %2, %3, %cst {dimension_numbers = #tpu.dot_dimension_numbers<[1], [0], [0], [1], [0, 0, 1, 1], [], []>} : vector<8x8xbf16>, vector<8x256xbf16>, vector<8x256xf32> -> vector<8x256xf32>
    %c0_4 = arith.constant 0 : index
    %c0_5 = arith.constant 0 : index
    %5 = vector.load %arg4[%c0_4, %c0_5] : memref<8x1xf32, #tpu.memory_space<vmem>>, vector<8x1xf32>
    %6 = vector.broadcast %5 : vector<8x1xf32> to vector<8x256xf32>
    %7 = arith.addf %4, %6 : vector<8x256xf32>
    %cst_6 = arith.constant 0.000000e+00 : f32
    %8 = vector.broadcast %cst_6 : f32 to vector<8x256xf32>
    %9 = arith.subf %8, %7 : vector<8x256xf32>
    %10 = math.exp %9 : vector<8x256xf32>
    %cst_7 = arith.constant 1.000000e+00 : f32
    %11 = vector.broadcast %cst_7 : f32 to vector<8x256xf32>
    %12 = arith.addf %11, %10 : vector<8x256xf32>
    %13 = tpu.reciprocal %12 {approx = true} : vector<8x256xf32> -> vector<8x256xf32>
    %c0_8 = arith.constant 0 : index
    %c0_9 = arith.constant 0 : index
    %c0_10 = arith.constant 0 : index
    %14 = vector.load %arg2[%c0_8, %c0_9, %c0_10] : memref<1x8x1xf32, #tpu.memory_space<vmem>>, vector<1x8x1xf32>
    %15 = vector.shape_cast %14 : vector<1x8x1xf32> to vector<8x1xf32>
    %16 = vector.broadcast %15 : vector<8x1xf32> to vector<8x256xf32>
    %17 = arith.addf %16, %13 : vector<8x256xf32>
    %18 = arith.mulf %1, %17 : vector<8x256xf32>
    %c0_11 = arith.constant 0 : index
    %c0_12 = arith.constant 0 : index
    %c0_13 = arith.constant 0 : index
    %19 = vector.load %arg6[%c0_11, %c0_12, %c0_13] : memref<1x8x256xf32, #tpu.memory_space<vmem>>, vector<1x8x256xf32>
    %20 = vector.shape_cast %19 : vector<1x8x256xf32> to vector<8x256xf32>
    %21 = vector.shape_cast %18 : vector<8x256xf32> to vector<1x8x256xf32>
    tpu.vector_store %arg6[%c0_11, %c0_12, %c0_13], %21 {strides = array<i32>} : memref<1x8x256xf32, #tpu.memory_space<vmem>>, vector<1x8x256xf32>,
    return
  }
  func.func @transform_0(%arg0: i32, %arg1: i32) -> (i32, i32, i32) {
    %c0_i32 = arith.constant 0 : i32
    %c0_i32_0 = arith.constant 0 : i32
    %c0_i32_1 = arith.constant 0 : i32
    return %arg0, %c0_i32, %c0_i32_0 : i32, i32, i32
  }
  func.func @transform_1(%arg0: i32, %arg1: i32) -> (i32, i32) {
    %c0_i32 = arith.constant 0 : i32
    %c0_i32_0 = arith.constant 0 : i32
    %c0_i32_1 = arith.constant 0 : i32
    return %c0_i32, %c0_i32_0 : i32, i32
  }
  func.func @transform_2(%arg0: i32, %arg1: i32) -> (i32, i32) {
    %c0_i32 = arith.constant 0 : i32
    %c0_i32_0 = arith.constant 0 : i32
    %c0_i32_1 = arith.constant 0 : i32
    return %c0_i32, %c0_i32_0 : i32, i32
  }
  func.func @transform_3(%arg0: i32, %arg1: i32) -> (i32, i32, i32) {
    %c0_i32 = arith.constant 0 : i32
    %c0_i32_0 = arith.constant 0 : i32
    return %arg0, %c0_i32, %arg1 : i32, i32, i32
  }
  func.func @transform_4(%arg0: i32, %arg1: i32) -> (i32, i32, i32) {
    %c0_i32 = arith.constant 0 : i32
    %c0_i32_0 = arith.constant 0 : i32
    return %arg0, %c0_i32, %arg1 : i32, i32, i32
  }
}

</mosaic_0001>

<llo_original>
// kernel: tpu_custom_call.1
$region0: #{tpu_custom_call.1}
  #allocation0 [shape = 'u32[]', space=smem, size = 0x4, offset = 0x4, fixed_abs, tag = 'smem constant byte address 0x4 - core index']
  #allocation1 [shape = 'u32[144,128]{1,0:T(1,128)}', space=vmem, size = 0x12000, scoped, tag = 'internal scratch']
  %s0 = inlined_call_operand.vmem [shape: f32[2,8,1], index: 0, kind: input, shape index: {}]
  %s1 = inlined_call_operand.vmem [shape: bf16[8,8], index: 1, kind: input, shape index: {}]
  %s2 = inlined_call_operand.vmem [shape: f32[8,1], index: 2, kind: input, shape index: {}]
  %s3 = inlined_call_operand.vmem [shape: f32[2,8,256], index: 3, kind: input, shape index: {}]
  %s4 = inlined_call_operand.hbm [shape: f32[2,8,256], index: 4, kind: output, shape index: {}]
  %s5 = sld [smem:[#allocation0]]
  $region49: #{tpu_custom_call.1} parent=0
    _
  %s7 = ssub.s32 1, %s5
  %s8 = scalar_select 0, %s7, %s5
  $region1: #{tpu_custom_call.1} parent=0
    #allocation2 [shape = 'u8[16384]{0}', space=vmem, size = 0x4000, scoped, tag = 'output window, operand 0']
    #allocation3 [shape = 's32[2]{0}', space=sflag, size = 0x8, scoped, tag = 'scoped memory for tpu_custom_call.1']
    %9 = vsyncpa [#allocation3], 0
    %s10 = scalar_lea.sflag [#allocation3], 1
    %11 = vsyncpa %s10, 0
    loop: start=0, step=1, limit=4
    $region2: #{tpu_custom_call.1} parent=1 // loop_pre_header
      _
    $region3: #{tpu_custom_call.1} parent=1 // loop_header
      %s13 = sphi 0, %s17
      %p14 = scmp.ge.s32.totalorder %s13, 4
      %s20 = sphi 0, %s32
      %s21 = sphi 0, %s28
      %s22 = sphi 0, %s20
      %s23 = sphi 0, %s21
      %s24 = sphi 0, %s22
      %s25 = sphi 0, %s23
      %s35 = sphi 0, %s37
      %s38 = sphi 0, %s35
      %s39 = sphi 0, %s38
      %s55 = sphi 0, %s39
      %s59 = sphi 0, %s59
      %s61 = sphi 0, %s59
      %s62 = sphi 0, %s61
      %s76 = sphi 0, %s62
      %s80 = sphi 0, %s80
      %s82 = sphi 0, %s80
      %s83 = sphi 0, %s82
      %s97 = sphi 0, %s83
      %s105 = sphi 0, %s107
      %s108 = sphi 0, %s105
      %s109 = sphi 0, %s108
      %s125 = sphi 0, %s109
      %s133 = sphi 0, %s135
      %s136 = sphi 0, %s133
      %s137 = sphi 0, %s136
      %s153 = sphi 0, %s137
    $region4: #{tpu_custom_call.1} parent=1 // loop_header_branch
      %16 = sbr.rel (%p14) target = $region8
    $region5: #{tpu_custom_call.1} parent=1 // loop_body
      %s18 = ssub.s32 %s13, 1
      %s19 = ssub.s32 %s13, 2
      %s26 = sadd.s32 1, %s21
      %p27 = scmp.ge.s32.totalorder %s26, 1
      %s28 = scalar_select %p27, 0, %s26
      %s29 = sadd.s32 1, %s20
      %s30 = scalar_select %p27, %s29, %s20
      %p31 = scmp.ge.s32.totalorder %s30, 2
      %s32 = scalar_select %p31, 0, %s30
      %s33 = ssub.s32 %s20, %s32
      %p34 = scmp.eq.s32.totalorder %s33, 0
      %s36 = sadd.s32 %s35, 1
      %s37 = scalar_select %p34, %s35, %s36
      %p40 = pneg %p34
      %p41 = scmp.eq.s32.totalorder %s13, 1
      %p42 = por %p40, %p41
      %p43 = scmp.ne.s32.totalorder %s35, %s38
      %p44 = scmp.eq.s32.totalorder %s13, 0
      %p45 = por %p43, %p44
      %p46 = scmp.ne.s32.totalorder %s35, %s38
      %p47 = scmp.eq.s32.totalorder %s18, 1
      %p48 = por %p46, %p47
      %p49 = scmp.ne.s32.totalorder %s38, %s39
      %p50 = scmp.eq.s32.totalorder %s18, 0
      %p51 = por %p49, %p50
      %p52 = scmp.ne.s32.totalorder %s38, %s39
      %p53 = scmp.eq.s32.totalorder %s19, 1
      %p54 = por %p52, %p53
      %p56 = scmp.ne.s32.totalorder %s39, %s55
      %p57 = scmp.eq.s32.totalorder %s19, 0
      %p58 = por %p56, %p57
      %s60 = sadd.s32 %s59, 1
      %p63 = scmp.eq.s32.totalorder %s13, 1
      %p64 = scmp.ne.s32.totalorder %s59, %s61
      %p65 = scmp.eq.s32.totalorder %s13, 0
      %p66 = por %p64, %p65
      %p67 = scmp.ne.s32.totalorder %s59, %s61
      %p68 = scmp.eq.s32.totalorder %s18, 1
      %p69 = por %p67, %p68
      %p70 = scmp.ne.s32.totalorder %s61, %s62
      %p71 = scmp.eq.s32.totalorder %s18, 0
      %p72 = por %p70, %p71
      %p73 = scmp.ne.s32.totalorder %s61, %s62
      %p74 = scmp.eq.s32.totalorder %s19, 1
      %p75 = por %p73, %p74
      %p77 = scmp.ne.s32.totalorder %s62, %s76
      %p78 = scmp.eq.s32.totalorder %s19, 0
      %p79 = por %p77, %p78
      %s81 = sadd.s32 %s80, 1
      %p84 = scmp.eq.s32.totalorder %s13, 1
      %p85 = scmp.ne.s32.totalorder %s80, %s82
      %p86 = scmp.eq.s32.totalorder %s13, 0
      %p87 = por %p85, %p86
      %p88 = scmp.ne.s32.totalorder %s80, %s82
      %p89 = scmp.eq.s32.totalorder %s18, 1
      %p90 = por %p88, %p89
      %p91 = scmp.ne.s32.totalorder %s82, %s83
      %p92 = scmp.eq.s32.totalorder %s18, 0
      %p93 = por %p91, %p92
      %p94 = scmp.ne.s32.totalorder %s82, %s83
      %p95 = scmp.eq.s32.totalorder %s19, 1
      %p96 = por %p94, %p95
      %p98 = scmp.ne.s32.totalorder %s83, %s97
      %p99 = scmp.eq.s32.totalorder %s19, 0
      %p100 = por %p98, %p99
      %s101 = ssub.s32 %s20, %s32
      %s102 = ssub.s32 %s21, %s28
      %s103 = sor.u32 %s101, %s102
      %p104 = scmp.eq.s32.totalorder %s103, 0
      %s106 = sadd.s32 %s105, 1
      %s107 = scalar_select %p104, %s105, %s106
      %p110 = pneg %p104
      %p111 = scmp.eq.s32.totalorder %s13, 1
      %p112 = por %p110, %p111
      %p113 = scmp.ne.s32.totalorder %s105, %s108
      %p114 = scmp.eq.s32.totalorder %s13, 0
      %p115 = por %p113, %p114
      %p116 = scmp.ne.s32.totalorder %s105, %s108
      %p117 = scmp.eq.s32.totalorder %s18, 1
      %p118 = por %p116, %p117
      %p119 = scmp.ne.s32.totalorder %s108, %s109
      %p120 = scmp.eq.s32.totalorder %s18, 0
      %p121 = por %p119, %p120
      %p122 = scmp.ne.s32.totalorder %s108, %s109
      %p123 = scmp.eq.s32.totalorder %s19, 1
      %p124 = por %p122, %p123
      %p126 = scmp.ne.s32.totalorder %s109, %s125
      %p127 = scmp.eq.s32.totalorder %s19, 0
      %p128 = por %p126, %p127
      %s129 = ssub.s32 %s20, %s32
      %s130 = ssub.s32 %s21, %s28
      %s131 = sor.u32 %s129, %s130
      %p132 = scmp.eq.s32.totalorder %s131, 0
      %s134 = sadd.s32 %s133, 1
      %s135 = scalar_select %p132, %s133, %s134
      %p138 = pneg %p132
      %p139 = scmp.eq.s32.totalorder %s13, 1
      %p140 = por %p138, %p139
      %p141 = scmp.ne.s32.totalorder %s133, %s136
      %p142 = scmp.eq.s32.totalorder %s13, 0
      %p143 = por %p141, %p142
      %p144 = scmp.ne.s32.totalorder %s133, %s136
      %p145 = scmp.eq.s32.totalorder %s18, 1
      %p146 = por %p144, %p145
      %p147 = scmp.ne.s32.totalorder %s136, %s137
      %p148 = scmp.eq.s32.totalorder %s18, 0
      %p149 = por %p147, %p148
      %p150 = scmp.ne.s32.totalorder %s136, %s137
      %p151 = scmp.eq.s32.totalorder %s19, 1
      %p152 = por %p150, %p151
      %p154 = scmp.ne.s32.totalorder %s137, %s153
      %p155 = scmp.eq.s32.totalorder %s19, 0
      %p156 = por %p154, %p155
      %p157 = scmp.le.s32.totalorder 1, %s13
      %p158 = scmp.lt.s32.totalorder %s13, 3
      %p159 = pnand %p157, %p158
      %p160 = pneg %p159
      // Predicated region
      $region9: #{tpu_custom_call.1} parent=5 // pred_check
        _
      $region10: #{tpu_custom_call.1} parent=5 // pred_check_branch
        %162 = sbr.rel (%p159) target = $region12
      $region11: #{tpu_custom_call.1} parent=5 // pred_region
        %s163 = ssub.s32 %s13, 1
        // Predicated region
        $region13: #{tpu_custom_call.1} parent=11 // pred_check
          %p164 = pneg %p72
        $region14: #{tpu_custom_call.1} parent=11 // pred_check_branch
          %166 = sbr.rel (%p164) target = $region16
        $region15: #{tpu_custom_call.1} parent=11 // pred_region
          _
        $region16: #{tpu_custom_call.1} parent=11 // pred_fallthru
          _
        // Predicated region
        $region17: #{tpu_custom_call.1} parent=11 // pred_check
          %p167 = pneg %p93
        $region18: #{tpu_custom_call.1} parent=11 // pred_check_branch
          %169 = sbr.rel (%p167) target = $region20
        $region19: #{tpu_custom_call.1} parent=11 // pred_region
          _
        $region20: #{tpu_custom_call.1} parent=11 // pred_fallthru
          _
      $region12: #{tpu_custom_call.1} parent=5 // pred_fallthru
        _
      %p170 = scmp.lt.s32.totalorder %s13, 2
      // Predicated region
      $region21: #{tpu_custom_call.1} parent=5 // pred_check
        %p171 = pneg %p170
      $region22: #{tpu_custom_call.1} parent=5 // pred_check_branch
        %173 = sbr.rel (%p171) target = $region24
      $region23: #{tpu_custom_call.1} parent=5 // pred_region
        // Predicated region
        $region25: #{tpu_custom_call.1} parent=23 // pred_check
          %p174 = pneg %p45
        $region26: #{tpu_custom_call.1} parent=23 // pred_check_branch
          %176 = sbr.rel (%p174) target = $region28
        $region27: #{tpu_custom_call.1} parent=23 // pred_region
          %p177 = scmp.lt.s32.totalorder %s20, 1
          %s178 = scalar_select %p177, %s20, 1
          %s179 = smul.addr %s178, 8
          %s180 = scalar_lea.vmem %s0, %s179
        $region28: #{tpu_custom_call.1} parent=23 // pred_fallthru
          _
        // Predicated region
        $region29: #{tpu_custom_call.1} parent=23 // pred_check
          %p181 = pneg %p115
        $region30: #{tpu_custom_call.1} parent=23 // pred_check_branch
          %183 = sbr.rel (%p181) target = $region32
        $region31: #{tpu_custom_call.1} parent=23 // pred_region
          %s184 = smul.u32 2, %s21
          %p185 = scmp.lt.s32.totalorder %s20, 1
          %s186 = scalar_select %p185, %s20, 1
          %p187 = scmp.lt.s32.totalorder %s184, 1
          %s188 = scalar_select %p187, %s184, 1
          %s189 = smul.addr %s186, 2
          %s190 = sadd.s32 %s188, %s189
          %s191 = smul.addr %s190, 8
          %s192 = scalar_lea.vmem %s3, %s191
          %s193 = smul.u32 2, %s21
        $region32: #{tpu_custom_call.1} parent=23 // pred_fallthru
          _
      $region24: #{tpu_custom_call.1} parent=5 // pred_fallthru
        _
      %p194 = scmp.le.s32.totalorder 1, %s13
      %p195 = scmp.lt.s32.totalorder %s13, 3
      %p196 = pnand %p194, %p195
      %p197 = pneg %p196
      // Predicated region
      $region33: #{tpu_custom_call.1} parent=5 // pred_check
        _
      $region34: #{tpu_custom_call.1} parent=5 // pred_check_branch
        %199 = sbr.rel (%p196) target = $region36
      $region35: #{tpu_custom_call.1} parent=5 // pred_region
        %s200 = ssub.s32 %s13, 1
        %p201 = scmp.lt.s32.totalorder %s22, 1
        %s202 = scalar_select %p201, %s22, 1
        %s203 = smul.addr %s202, 8
        %s204 = scalar_lea.vmem %s0, %s203
        %p205 = pneg %p51
        %p206 = pneg %p48
        %p207 = pneg %p72
        %p208 = pneg %p69
        %p209 = pneg %p93
        %p210 = pneg %p90
        %s211 = smul.u32 2, %s23
        %p212 = scmp.lt.s32.totalorder %s22, 1
        %s213 = scalar_select %p212, %s22, 1
        %p214 = scmp.lt.s32.totalorder %s211, 1
        %s215 = scalar_select %p214, %s211, 1
        %s216 = smul.addr %s213, 2
        %s217 = sadd.s32 %s215, %s216
        %s218 = smul.addr %s217, 8
        %s219 = scalar_lea.vmem %s3, %s218
        %p220 = pneg %p121
        %p221 = pneg %p118
        %p222 = pneg %p149
        %p223 = pneg %p146
        %s224 = sand.u32 %s136, 1
        %s225 = scalar_lea.sflag [#allocation3], %s224
        %s226 = sand.u32 %s136, 1
        %s227 = smul.addr %s226, 16
        %s228 = scalar_lea.vmem [#allocation2], %s227
        %p229 = scmp.lt.s32.totalorder %s22, 1
        %s230 = scalar_select %p229, %s22, 1
        %s231 = smul.addr %s230, 8
        %s232 = scalar_lea.vmem %s0, %s231
        %s233 = smul.u32 2, %s23
        %p234 = scmp.lt.s32.totalorder %s22, 1
        %s235 = scalar_select %p234, %s22, 1
        %p236 = scmp.lt.s32.totalorder %s233, 1
        %s237 = scalar_select %p236, %s233, 1
        %s238 = smul.addr %s235, 2
        %s239 = sadd.s32 %s237, %s238
        %s240 = smul.addr %s239, 8
        %s241 = scalar_lea.vmem %s3, %s240
        %s242 = smul.u32 2, %s23
        %s243 = smul.u32 2, %s23
        %v245 = vld [vmem:[%s241] sm:$0xff]
        %v246 = vld [vmem:[%s241 + $0x8] sm:$0xff]
        %v247 = vld [vmem:[%s1] sm:$0xf]
        %v248 = vpack.c.bf16 %v245, %v245
        %v249 = vpack.c.bf16 %v246, %v246
        %v250 = vld [vmem:[%s2] sm:$0xff]
        %252 = vset.pattern.permute.xlu0 0
        %253 = vperm.xlu0 %252, %v250
        %v254 = vpop.permute.xlu0 %253
        %vm256 = vcmask 64512
        %v258 = vsel %vm256, %v247, 0
        %vm260 = vcmask 1043456
        %v262 = vsel %vm260, %v248, 0
        %v265 = vsel %vm260, %v249, 0
        %267 = vmatprep.subr.bf16.mxu0 %v265
        %268 = vmatpush1.bf16.msra.mxu0 %v262
        %269 = vmatprep.subr.bf16.mxu0 0
        %270 = vmatpush1.bf16.msra.mxu0 0
        %271 = vmatprep.subr.bf16.mxu0 0
        %272 = vmatpush1.bf16.msra.mxu0 0
        %273 = vmatprep.subr.bf16.mxu0 0
        %274 = vmatpush1.bf16.msra.mxu0 0
        %275 = vmatprep.subr.bf16.mxu0 0
        %276 = vmatpush1.bf16.msra.mxu0 0
        %277 = vmatprep.subr.bf16.mxu0 0
        %278 = vmatpush1.bf16.msra.mxu0 0
        %279 = vmatprep.subr.bf16.mxu0 0
        %280 = vmatpush1.bf16.msra.mxu0 0
        %281 = vmatprep.subr.bf16.mxu0 0
        %282 = vmatpush1.bf16.msra.mxu0 0
        %283 = vmatprep.subr.bf16.mxu0 0
        %284 = vmatpush1.bf16.msra.mxu0 0
        %285 = vmatprep.subr.bf16.mxu0 0
        %286 = vmatpush1.bf16.msra.mxu0 0
        %287 = vmatprep.subr.bf16.mxu0 0
        %288 = vmatpush1.bf16.msra.mxu0 0
        %289 = vmatprep.subr.bf16.mxu0 0
        %290 = vmatpush1.bf16.msra.mxu0 0
        %291 = vmatprep.subr.bf16.mxu0 0
        %292 = vmatpush1.bf16.msra.mxu0 0
        %293 = vmatprep.subr.bf16.mxu0 0
        %294 = vmatpush1.bf16.msra.mxu0 0
        %295 = vmatprep.subr.bf16.mxu0 0
        %296 = vmatpush1.bf16.msra.mxu0 0
        %297 = vmatprep.subr.bf16.mxu0 0
        %298 = vmatpush1.bf16.msra.mxu0 0
        %299 = vmatprep.mubr.bf16.mxu0 0
        %300 = vmatmul.mubr.bf16.gmra.mrb[0].mxu0 %v258
        %v301 = vpop.f32.mrb[0].mxu0
        %v302 = vadd.f32 %v254, %v301
        %v303 = vpop.f32.mrb[0].mxu0
        %v304 = vadd.f32 %v254, %v303
        %v305 = vpop.f32.mrb[0].mxu0
        %v306 = vpop.f32.mrb[0].mxu0
        %307 = vdwg.mxu0
        %v308 = vsub.f32 0.0, %v302
        %v309 = vsub.f32 0.0, %v304
        %v310 = vmul.f32 %v308, 1.442695
        %v311 = vpow.pop %v310
        %v312 = vmul.f32 %v309, 1.442695
        %v313 = vpow.pop %v312
        %v314 = vadd.f32 %v311, 1.0
        %v315 = vadd.f32 %v313, 1.0
        %v316 = vrcp.pop %v314
        %v317 = vrcp.pop %v315
        %v318 = vld [vmem:[%s232] sm:$0xff]
        %320 = vset.pattern.permute.xlu0 0
        %321 = vperm.xlu0 %320, %v318
        %v322 = vpop.permute.xlu0 %321
        %v324 = vadd.f32 %v322, %v316
        %v325 = vadd.f32 %v322, %v317
        %v326 = vmul.f32 %v245, %v324
        %v327 = vmul.f32 %v246, %v325
        %328 = vst [vmem:[%s228] sm:$0xff] %v326
        %329 = vst [vmem:[%s228 + $0x8] sm:$0xff] %v327
        %s330 = sand.u32 %s136, 1
        %s331 = scalar_lea.sflag [#allocation3], %s330
        %s332 = sand.u32 %s136, 1
        %s333 = smul.addr %s332, 16
        %s334 = scalar_lea.vmem [#allocation2], %s333
        // Predicated region
        $region37: #{tpu_custom_call.1} parent=35 // pred_check
          %p335 = pneg %p146
        $region38: #{tpu_custom_call.1} parent=35 // pred_check_branch
          %337 = sbr.rel (%p335) target = $region40
        $region39: #{tpu_custom_call.1} parent=35 // pred_region
          %s338 = smul.u32 2, %s23
          %s340 = ssub.s32 256, 256
          %341 = vsyncadd %s331, %s340
          %s342 = smul.addr %s22, 2
          %s343 = sadd.s32 %s338, %s342
          %s344 = smul.addr %s343, 128
          %s345 = scalar_lea.hbm %s4, %s344
          %s347 = sshll.u32 %s334, 4
          %s348 = int_to_ptr.vmem [resolvable:$true] %s347
          %350 = dma.vmem_to_hbm [thread:$0]  %s348, 256, %s345, %s331
        $region40: #{tpu_custom_call.1} parent=35 // pred_fallthru
          _
      $region36: #{tpu_custom_call.1} parent=5 // pred_fallthru
        _
      %p351 = scmp.le.s32.totalorder 2, %s13
      // Predicated region
      $region41: #{tpu_custom_call.1} parent=5 // pred_check
        %p352 = pneg %p351
      $region42: #{tpu_custom_call.1} parent=5 // pred_check_branch
        %354 = sbr.rel (%p352) target = $region44
      $region43: #{tpu_custom_call.1} parent=5 // pred_region
        %s355 = ssub.s32 %s13, 2
        // Predicated region
        $region45: #{tpu_custom_call.1} parent=43 // pred_check
          %p356 = pneg %p152
        $region46: #{tpu_custom_call.1} parent=43 // pred_check_branch
          %358 = sbr.rel (%p356) target = $region48
        $region47: #{tpu_custom_call.1} parent=43 // pred_region
          %s359 = sand.u32 %s137, 1
          %s360 = scalar_lea.sflag [#allocation3], %s359
          %s361 = sand.u32 %s137, 1
          %s362 = smul.addr %s361, 16
          %s363 = scalar_lea.vmem [#allocation2], %s362
          %364 = dma.done %s360, 256
        $region48: #{tpu_custom_call.1} parent=43 // pred_fallthru
          _
      $region44: #{tpu_custom_call.1} parent=5 // pred_fallthru
        _
    $region6: #{tpu_custom_call.1} parent=1 // loop_footer
      %s17 = sadd.s32 1, %s13
    $region7: #{tpu_custom_call.1} parent=1 // loop_footer_branch
      %12 = sbr.rel target = $region3
    $region8: #{tpu_custom_call.1} parent=1 // loop_exit
      _
    %365 = vsyncpa [#allocation3], 1
    %s366 = scalar_lea.sflag [#allocation3], 1
    %367 = vsyncpa %s366, 1

</llo_original>
